<compile_context>
chip_gen: v7x
topology: tpu7x:2x2x1
jax: 0.10.0
libtpu: 0.0.40
codegen_flags: <defaults>
</compile_context>

<pallas_src>
import numpy as np
import jax
import jax.numpy as jnp
from jax.experimental import pallas as pl
from jax.experimental.pallas import tpu as pltpu


def generator_kernel(coords_ref, w_ref, cvx_ref, ccv_ref, out_ref):
    # coords_ref : (3, TX)        shared [x; y; 1] tile, lane-dense
    # w_ref      : (BT*P, 3)      batch-stacked per-sample hyperplanes [w0, w1, b]
    # cvx_ref    : (BT*C, BT*P)   block-diagonal convex weights
    # ccv_ref    : (BT, BT*C)     block-diagonal concave weights
    # out_ref    : (BT, TX)
    mxu_dtype = cvx_ref.dtype

    # Layer 1 on the MXU (K=3; bias folded in via the ones row of coords).
    x = jnp.dot(w_ref[...], coords_ref[...],
                preferred_element_type=jnp.float32)              # (BT*P, TX) f32
    x = jnp.maximum(x, 0.0)                                      # relu (f32 VPU)

    # Layer 2: one wide block-diagonal matmul covers all BT folded samples.
    h = jnp.dot(cvx_ref[...], x.astype(mxu_dtype),
                preferred_element_type=jnp.float32)              # (BT*C, TX) f32
    # Note: the `1 -` could be folded into the matmul via an augmented ones row,
    # but with C<=16 per sample it is far off the critical path; kept exact.
    h = jnp.clip(1.0 - h, 0.0, 1.0)

    # Layer 3: block-diagonal concave reduction -> one lane-dense row per sample.
    o = jnp.dot(ccv_ref[...], h.astype(ccv_ref.dtype),
                preferred_element_type=jnp.float32)              # (BT, TX) f32
    out_ref[...] = jnp.clip(o, 0.0, 1.0).astype(out_ref.dtype)


def _vmem_plan():
    """Per-generation (tx_budget_bytes, vmem_limit_bytes)."""
    try:
        cap = pltpu.get_tpu_info().vmem_capacity_bytes
    except Exception:
        cap = 64 << 20
    if cap >= (96 << 20):            # v5e / v6e: 128 MiB physical VMEM
        return 32 << 20, 48 << 20
    return 14 << 20, 28 << 20        # v7x: 64 MiB physical, 32 MiB scoped default


def _pick_bt(B, cap=8):
    """Return (padded batch Bp, batch tile BT).  BT == Bp or BT % 8 == 0 so the
    2-D (Bp, X) output block (BT, TX) satisfies the (8, 128) block constraint."""
    if B <= cap:
        return B, B
    Bp = ((B + 7) // 8) * 8          # padded samples are zero-weights, sliced off
    return Bp, 8


def _pick_tx(X, P, C, BT, budget_bytes):
    """Largest lane-aligned X tile whose per-column footprint (double-buffered
    coords/out blocks + live f32 x/h intermediates for all BT folded samples)
    stays inside the per-generation VMEM budget."""
    if X <= 128:
        return X
    per_col = 4 * (2 * 8 + 2 * BT + 2 * BT * (P + C + 1) + 16)
    cap = max(128, min(8192, (budget_bytes // per_col) // 128 * 128))
    tx = (min(cap, X) // 128) * 128
    while tx > 0 and X % tx != 0:
        tx -= 128
    return tx if tx > 0 else X


def _maybe_split_for_two_cores(X, TX, Bp, BT):
    """v7x has 2 TensorCores; a single-step grid leaves one idle."""
    if (X // TX) * (Bp // BT) >= 2 or TX <= 128:
        return TX
    tx = (min(TX // 2, X // 2) // 128) * 128
    while tx >= 128 and X % tx != 0:
        tx -= 128
    return tx if tx >= 128 else TX


def generator_forward(coords, weights, bias, convex_w, concave_w, *,
                      mxu_dtype=jnp.float32, out_dtype=jnp.float32):
    """Phase-0 BSP generator forward.

    coords [X,2], weights [B,2,P], bias [B,1,P], convex_w [C,P], concave_w [1,C]
    -> [B, X]

    mxu_dtype=jnp.bfloat16 runs all three matmuls at bf16 MXU rate (f32
    accumulation, f32 VPU element-ops so it is also v5e-safe); f32 stays the
    default for bit-accuracy against the reference.
    """
    B, _, P = weights.shape
    X = coords.shape[0]
    C = convex_w.shape[0]

    tx_budget, vmem_limit = _vmem_plan()
    Bp, BT = _pick_bt(B)
    TX = _pick_tx(X, P, C, BT, tx_budget)
    TX = _maybe_split_for_two_cores(X, TX, Bp, BT)

    # ---- layout prep (done once, in XLA, outside the kernel) ----------------
    coords_aug = jnp.concatenate(
        [coords.T, jnp.ones((1, X), coords.dtype)], axis=0).astype(mxu_dtype)  # (3, X)

    w_aug = jnp.concatenate(
        [jnp.transpose(weights, (0, 2, 1)),            # (B, P, 2)
         jnp.transpose(bias, (0, 2, 1))], axis=-1)     # (B, P, 3)
    if Bp != B:
        w_aug = jnp.concatenate(
            [w_aug, jnp.zeros((Bp - B, P, 3), w_aug.dtype)], axis=0)
    w_stack = w_aug.reshape(Bp * P, 3).astype(mxu_dtype)                        # (Bp*P, 3)

    # Block-diagonal weights: one wide MXU matmul per layer per grid step
    # (K = BT*P fills the systolic depth instead of BT separate K=P pushes).
    eye = jnp.eye(BT, dtype=mxu_dtype)
    cvx_bd = jnp.kron(eye, convex_w.astype(mxu_dtype))                          # (BT*C, BT*P)
    ccv_bd = jnp.kron(eye, concave_w.astype(mxu_dtype))                         # (BT, BT*C)

    out = pl.pallas_call(
        generator_kernel,
        out_shape=jax.ShapeDtypeStruct((Bp, X), out_dtype),
        grid_spec=pltpu.PrefetchScalarGridSpec(
            num_scalar_prefetch=0,
            # batch innermost: coords / cvx_bd / ccv_bd blocks stay resident and
            # only the small (BT*P, 3) hyperplane block changes per batch step.
            grid=(X // TX, Bp // BT),
            in_specs=[
                pl.BlockSpec((3, TX), lambda xi, bi: (0, xi)),          # coords_aug
                pl.BlockSpec((BT * P, 3), lambda xi, bi: (bi, 0)),      # w_stack
                pl.BlockSpec((BT * C, BT * P), lambda xi, bi: (0, 0)),  # cvx_bd
                pl.BlockSpec((BT, BT * C), lambda xi, bi: (0, 0)),      # ccv_bd
            ],
            out_specs=pl.BlockSpec((BT, TX), lambda xi, bi: (bi, xi)),
        ),
        compiler_params=pltpu.CompilerParams(
            dimension_semantics=("parallel", "parallel"),
            vmem_limit_bytes=vmem_limit,
        ),
    )(coords_aug, w_stack, cvx_bd, ccv_bd)
    return out[:B]


if __name__ == "__main__":
    # Small shapes consistent with the module.
    B = 2
    num_planes = 32       # P
    num_primitives = 16   # C
    resolution = 16
    X = resolution * resolution

    key = jax.random.PRNGKey(0)
    k1, k2, k3, k4 = jax.random.split(key, 4)

    # Forward-pass inputs (produced elsewhere by an encoder in the real model).
    weights = jax.random.normal(k1, (B, 2, num_planes), dtype=jnp.float32)
    bias = jax.random.normal(k2, (B, 1, num_planes), dtype=jnp.float32)

    # Module parameters, deterministic synthetic init matching __init__:
    #   convex_weights  ~ N(0, 0.02),    shape [num_primitives, num_planes]
    #   concave_weights ~ N(1e-5, 0.02), shape [1, num_primitives]
    convex_w = 0.02 * jax.random.normal(k3, (num_primitives, num_planes), dtype=jnp.float32)
    concave_w = 1e-5 + 0.02 * jax.random.normal(k4, (1, num_primitives), dtype=jnp.float32)

    # coords buffer exactly as built in __init__.
    ii, jj = np.meshgrid(np.arange(resolution), np.arange(resolution), indexing="ij")
    coords_np = np.stack([ii, jj], axis=-1).astype(np.float32)
    coords_np = (coords_np + 0.5) / resolution - 0.5
    coords = jnp.asarray(coords_np.reshape(X, 2))

    out = generator_forward(coords, weights, bias, convex_w, concave_w)
    out = jax.block_until_ready(out)

    # Pure-JAX reference of forward_phase_zero for verification.
    x = jnp.einsum("xd,bdp->bxp", coords, weights) + bias
    x = jnp.maximum(x, 0.0)
    x = jnp.einsum("bxp,cp->bxc", x, convex_w)
    x = jnp.clip(1.0 - x, 0.0, 1.0)
    x = jnp.einsum("bxc,zc->bx", x, concave_w)
    ref = jnp.clip(x, 0.0, 1.0)

    assert out.shape == (B, X), out.shape
    np.testing.assert_allclose(np.asarray(out), np.asarray(ref), rtol=1e-5, atol=1e-5)
    print("KERNEL_OK")
</pallas_src>

<mosaic_0001>
module attributes {stable_mosaic.version = 11 : i64} {
  func.func @generator_kernel(%arg0: i32, %arg1: i32, %arg2: memref<3x128xf32, #tpu.memory_space<vmem>>, %arg3: memref<64x3xf32, #tpu.memory_space<vmem>>, %arg4: memref<32x64xf32, #tpu.memory_space<vmem>>, %arg5: memref<2x32xf32, #tpu.memory_space<vmem>>, %arg6: memref<2x128xf32, #tpu.memory_space<vmem>>) attributes {dimension_semantics = [#tpu.dimension_semantics<parallel>, #tpu.dimension_semantics<parallel>], iteration_bounds = array<i64: 2, 1>, scalar_prefetch = 0 : i64, scratch_operands = 0 : i64, tpu.core_type = #tpu.core_type<tc>, window_params = [{transform_indices = @transform_0, window_bounds = array<i64: 3, 128>}, {transform_indices = @transform_1, window_bounds = array<i64: 64, 3>}, {pipeline_mode = #tpu.pipeline_mode<synchronous>, transform_indices = @transform_2, window_bounds = array<i64: 32, 64>}, {pipeline_mode = #tpu.pipeline_mode<synchronous>, transform_indices = @transform_3, window_bounds = array<i64: 2, 32>}, {transform_indices = @transform_4, window_bounds = array<i64: 2, 128>}]} {
    %c0 = arith.constant 0 : index
    %c0_0 = arith.constant 0 : index
    %0 = vector.load %arg3[%c0, %c0_0] : memref<64x3xf32, #tpu.memory_space<vmem>>, vector<64x3xf32>
    %c0_1 = arith.constant 0 : index
    %c0_2 = arith.constant 0 : index
    %1 = vector.load %arg2[%c0_1, %c0_2] : memref<3x128xf32, #tpu.memory_space<vmem>>, vector<3x128xf32>
    %cst = arith.constant dense<0.000000e+00> : vector<64x128xf32>
    %2 = tpu.matmul %0, %1, %cst {dimension_numbers = #tpu.dot_dimension_numbers<[1], [0], [0], [1], [0, 0, 1, 1], [], []>} : vector<64x3xf32>, vector<3x128xf32>, vector<64x128xf32> -> vector<64x128xf32>
    %cst_3 = arith.constant 0.000000e+00 : f32
    %3 = vector.broadcast %cst_3 : f32 to vector<64x128xf32>
    %4 = arith.maximumf %2, %3 : vector<64x128xf32>
    %c0_4 = arith.constant 0 : index
    %c0_5 = arith.constant 0 : index
    %5 = vector.load %arg4[%c0_4, %c0_5] : memref<32x64xf32, #tpu.memory_space<vmem>>, vector<32x64xf32>
    %cst_6 = arith.constant dense<0.000000e+00> : vector<32x128xf32>
    %6 = tpu.matmul %5, %4, %cst_6 {dimension_numbers = #tpu.dot_dimension_numbers<[1], [0], [0], [1], [0, 0, 1, 1], [], []>} : vector<32x64xf32>, vector<64x128xf32>, vector<32x128xf32> -> vector<32x128xf32>
    %cst_7 = arith.constant 1.000000e+00 : f32
    %7 = vector.broadcast %cst_7 : f32 to vector<32x128xf32>
    %8 = arith.subf %7, %6 : vector<32x128xf32>
    %cst_8 = arith.constant 0.000000e+00 : f32
    %cst_9 = arith.constant 1.000000e+00 : f32
    %9 = vector.broadcast %cst_8 : f32 to vector<32x128xf32>
    %10 = arith.maximumf %9, %8 : vector<32x128xf32>
    %11 = vector.broadcast %cst_9 : f32 to vector<32x128xf32>
    %12 = arith.minimumf %11, %10 : vector<32x128xf32>
    %c0_10 = arith.constant 0 : index
    %c0_11 = arith.constant 0 : index
    %13 = vector.load %arg5[%c0_10, %c0_11] : memref<2x32xf32, #tpu.memory_space<vmem>>, vector<2x32xf32>
    %cst_12 = arith.constant dense<0.000000e+00> : vector<2x128xf32>
    %14 = tpu.matmul %13, %12, %cst_12 {dimension_numbers = #tpu.dot_dimension_numbers<[1], [0], [0], [1], [0, 0, 1, 1], [], []>} : vector<2x32xf32>, vector<32x128xf32>, vector<2x128xf32> -> vector<2x128xf32>
    %cst_13 = arith.constant 0.000000e+00 : f32
    %cst_14 = arith.constant 1.000000e+00 : f32
    %15 = vector.broadcast %cst_13 : f32 to vector<2x128xf32>
    %16 = arith.maximumf %15, %14 : vector<2x128xf32>
    %17 = vector.broadcast %cst_14 : f32 to vector<2x128xf32>
    %18 = arith.minimumf %17, %16 : vector<2x128xf32>
    %c0_15 = arith.constant 0 : index
    %c0_16 = arith.constant 0 : index
    %19 = vector.load %arg6[%c0_15, %c0_16] : memref<2x128xf32, #tpu.memory_space<vmem>>, vector<2x128xf32>
    tpu.vector_store %arg6[%c0_15, %c0_16], %18 {strides = array<i32>} : memref<2x128xf32, #tpu.memory_space<vmem>>, vector<2x128xf32>,
    return
  }
  func.func @transform_0(%arg0: i32, %arg1: i32) -> (i32, i32) {
    %c0_i32 = arith.constant 0 : i32
    %c0_i32_0 = arith.constant 0 : i32
    return %c0_i32, %arg0 : i32, i32
  }
  func.func @transform_1(%arg0: i32, %arg1: i32) -> (i32, i32) {
    %c0_i32 = arith.constant 0 : i32
    %c0_i32_0 = arith.constant 0 : i32
    return %arg1, %c0_i32 : i32, i32
  }
  func.func @transform_2(%arg0: i32, %arg1: i32) -> (i32, i32) {
    %c0_i32 = arith.constant 0 : i32
    %c0_i32_0 = arith.constant 0 : i32
    %c0_i32_1 = arith.constant 0 : i32
    return %c0_i32, %c0_i32_0 : i32, i32
  }
  func.func @transform_3(%arg0: i32, %arg1: i32) -> (i32, i32) {
    %c0_i32 = arith.constant 0 : i32
    %c0_i32_0 = arith.constant 0 : i32
    %c0_i32_1 = arith.constant 0 : i32
    return %c0_i32, %c0_i32_0 : i32, i32
  }
  func.func @transform_4(%arg0: i32, %arg1: i32) -> (i32, i32) {
    %c0_i32 = arith.constant 0 : i32
    return %arg1, %arg0 : i32, i32
  }
}

</mosaic_0001>

<llo_original>
// kernel: tpu_custom_call.1
$region0: #{tpu_custom_call.1}
  #allocation0 [shape = 'u32[]', space=smem, size = 0x4, offset = 0x4, fixed_abs, tag = 'smem constant byte address 0x4 - core index']
  #allocation1 [shape = 'u32[144,128]{1,0:T(1,128)}', space=vmem, size = 0x12000, scoped, tag = 'internal scratch']
  %s0 = inlined_call_operand.vmem [shape: f32[3,256], index: 0, kind: input, shape index: {}]
  %s1 = inlined_call_operand.vmem [shape: f32[64,3], index: 1, kind: input, shape index: {}]
  %s2 = inlined_call_operand.vmem [shape: f32[32,64], index: 2, kind: input, shape index: {}]
  %s3 = inlined_call_operand.vmem [shape: f32[2,32], index: 3, kind: input, shape index: {}]
  %s4 = inlined_call_operand.hbm [shape: f32[2,256], index: 4, kind: output, shape index: {}]
  %s5 = sld [smem:[#allocation0]]
  $region49: #{tpu_custom_call.1} parent=0
    _
  %s7 = ssub.s32 1, %s5
  %s8 = scalar_select 0, %s7, %s5
  $region1: #{tpu_custom_call.1} parent=0
    #allocation2 [shape = 'u8[2048]{0}', space=vmem, size = 0x800, scoped, tag = 'output window, operand 0']
    #allocation3 [shape = 's32[2]{0}', space=sflag, size = 0x8, scoped, tag = 'scoped memory for tpu_custom_call.1']
    %9 = vsyncpa [#allocation3], 0
    %s10 = scalar_lea.sflag [#allocation3], 1
    %11 = vsyncpa %s10, 0
    loop: start=0, step=1, limit=4
    $region2: #{tpu_custom_call.1} parent=1 // loop_pre_header
      _
    $region3: #{tpu_custom_call.1} parent=1 // loop_header
      %s13 = sphi 0, %s17
      %p14 = scmp.ge.s32.totalorder %s13, 4
      %s20 = sphi 0, %s32
      %s21 = sphi 0, %s28
      %s22 = sphi 0, %s20
      %s23 = sphi 0, %s21
      %s24 = sphi 0, %s22
      %s25 = sphi 0, %s23
      %s35 = sphi 0, %s37
      %s38 = sphi 0, %s35
      %s39 = sphi 0, %s38
      %s55 = sphi 0, %s39
      %s61 = sphi 0, %s63
      %s64 = sphi 0, %s61
      %s65 = sphi 0, %s64
      %s81 = sphi 0, %s65
      %s85 = sphi 0, %s85
      %s87 = sphi 0, %s85
      %s88 = sphi 0, %s87
      %s102 = sphi 0, %s88
      %s106 = sphi 0, %s106
      %s108 = sphi 0, %s106
      %s109 = sphi 0, %s108
      %s123 = sphi 0, %s109
      %s131 = sphi 0, %s133
      %s134 = sphi 0, %s131
      %s135 = sphi 0, %s134
      %s151 = sphi 0, %s135
    $region4: #{tpu_custom_call.1} parent=1 // loop_header_branch
      %16 = sbr.rel (%p14) target = $region8
    $region5: #{tpu_custom_call.1} parent=1 // loop_body
      %s18 = ssub.s32 %s13, 1
      %s19 = ssub.s32 %s13, 2
      %s26 = sadd.s32 1, %s21
      %p27 = scmp.ge.s32.totalorder %s26, 1
      %s28 = scalar_select %p27, 0, %s26
      %s29 = sadd.s32 1, %s20
      %s30 = scalar_select %p27, %s29, %s20
      %p31 = scmp.ge.s32.totalorder %s30, 2
      %s32 = scalar_select %p31, 0, %s30
      %s33 = ssub.s32 %s20, %s32
      %p34 = scmp.eq.s32.totalorder %s33, 0
      %s36 = sadd.s32 %s35, 1
      %s37 = scalar_select %p34, %s35, %s36
      %p40 = pneg %p34
      %p41 = scmp.eq.s32.totalorder %s13, 1
      %p42 = por %p40, %p41
      %p43 = scmp.ne.s32.totalorder %s35, %s38
      %p44 = scmp.eq.s32.totalorder %s13, 0
      %p45 = por %p43, %p44
      %p46 = scmp.ne.s32.totalorder %s35, %s38
      %p47 = scmp.eq.s32.totalorder %s18, 1
      %p48 = por %p46, %p47
      %p49 = scmp.ne.s32.totalorder %s38, %s39
      %p50 = scmp.eq.s32.totalorder %s18, 0
      %p51 = por %p49, %p50
      %p52 = scmp.ne.s32.totalorder %s38, %s39
      %p53 = scmp.eq.s32.totalorder %s19, 1
      %p54 = por %p52, %p53
      %p56 = scmp.ne.s32.totalorder %s39, %s55
      %p57 = scmp.eq.s32.totalorder %s19, 0
      %p58 = por %p56, %p57
      %s59 = ssub.s32 %s21, %s28
      %p60 = scmp.eq.s32.totalorder %s59, 0
      %s62 = sadd.s32 %s61, 1
      %s63 = scalar_select %p60, %s61, %s62
      %p66 = pneg %p60
      %p67 = scmp.eq.s32.totalorder %s13, 1
      %p68 = por %p66, %p67
      %p69 = scmp.ne.s32.totalorder %s61, %s64
      %p70 = scmp.eq.s32.totalorder %s13, 0
      %p71 = por %p69, %p70
      %p72 = scmp.ne.s32.totalorder %s61, %s64
      %p73 = scmp.eq.s32.totalorder %s18, 1
      %p74 = por %p72, %p73
      %p75 = scmp.ne.s32.totalorder %s64, %s65
      %p76 = scmp.eq.s32.totalorder %s18, 0
      %p77 = por %p75, %p76
      %p78 = scmp.ne.s32.totalorder %s64, %s65
      %p79 = scmp.eq.s32.totalorder %s19, 1
      %p80 = por %p78, %p79
      %p82 = scmp.ne.s32.totalorder %s65, %s81
      %p83 = scmp.eq.s32.totalorder %s19, 0
      %p84 = por %p82, %p83
      %s86 = sadd.s32 %s85, 1
      %p89 = scmp.eq.s32.totalorder %s13, 1
      %p90 = scmp.ne.s32.totalorder %s85, %s87
      %p91 = scmp.eq.s32.totalorder %s13, 0
      %p92 = por %p90, %p91
      %p93 = scmp.ne.s32.totalorder %s85, %s87
      %p94 = scmp.eq.s32.totalorder %s18, 1
      %p95 = por %p93, %p94
      %p96 = scmp.ne.s32.totalorder %s87, %s88
      %p97 = scmp.eq.s32.totalorder %s18, 0
      %p98 = por %p96, %p97
      %p99 = scmp.ne.s32.totalorder %s87, %s88
      %p100 = scmp.eq.s32.totalorder %s19, 1
      %p101 = por %p99, %p100
      %p103 = scmp.ne.s32.totalorder %s88, %s102
      %p104 = scmp.eq.s32.totalorder %s19, 0
      %p105 = por %p103, %p104
      %s107 = sadd.s32 %s106, 1
      %p110 = scmp.eq.s32.totalorder %s13, 1
      %p111 = scmp.ne.s32.totalorder %s106, %s108
      %p112 = scmp.eq.s32.totalorder %s13, 0
      %p113 = por %p111, %p112
      %p114 = scmp.ne.s32.totalorder %s106, %s108
      %p115 = scmp.eq.s32.totalorder %s18, 1
      %p116 = por %p114, %p115
      %p117 = scmp.ne.s32.totalorder %s108, %s109
      %p118 = scmp.eq.s32.totalorder %s18, 0
      %p119 = por %p117, %p118
      %p120 = scmp.ne.s32.totalorder %s108, %s109
      %p121 = scmp.eq.s32.totalorder %s19, 1
      %p122 = por %p120, %p121
      %p124 = scmp.ne.s32.totalorder %s109, %s123
      %p125 = scmp.eq.s32.totalorder %s19, 0
      %p126 = por %p124, %p125
      %s127 = ssub.s32 %s21, %s28
      %s128 = ssub.s32 %s20, %s32
      %s129 = sor.u32 %s127, %s128
      %p130 = scmp.eq.s32.totalorder %s129, 0
      %s132 = sadd.s32 %s131, 1
      %s133 = scalar_select %p130, %s131, %s132
      %p136 = pneg %p130
      %p137 = scmp.eq.s32.totalorder %s13, 1
      %p138 = por %p136, %p137
      %p139 = scmp.ne.s32.totalorder %s131, %s134
      %p140 = scmp.eq.s32.totalorder %s13, 0
      %p141 = por %p139, %p140
      %p142 = scmp.ne.s32.totalorder %s131, %s134
      %p143 = scmp.eq.s32.totalorder %s18, 1
      %p144 = por %p142, %p143
      %p145 = scmp.ne.s32.totalorder %s134, %s135
      %p146 = scmp.eq.s32.totalorder %s18, 0
      %p147 = por %p145, %p146
      %p148 = scmp.ne.s32.totalorder %s134, %s135
      %p149 = scmp.eq.s32.totalorder %s19, 1
      %p150 = por %p148, %p149
      %p152 = scmp.ne.s32.totalorder %s135, %s151
      %p153 = scmp.eq.s32.totalorder %s19, 0
      %p154 = por %p152, %p153
      %p155 = scmp.le.s32.totalorder 1, %s13
      %p156 = scmp.lt.s32.totalorder %s13, 3
      %p157 = pnand %p155, %p156
      %p158 = pneg %p157
      // Predicated region
      $region9: #{tpu_custom_call.1} parent=5 // pred_check
        _
      $region10: #{tpu_custom_call.1} parent=5 // pred_check_branch
        %160 = sbr.rel (%p157) target = $region12
      $region11: #{tpu_custom_call.1} parent=5 // pred_region
        %s161 = ssub.s32 %s13, 1
        // Predicated region
        $region13: #{tpu_custom_call.1} parent=11 // pred_check
          %p162 = pneg %p77
        $region14: #{tpu_custom_call.1} parent=11 // pred_check_branch
          %164 = sbr.rel (%p162) target = $region16
        $region15: #{tpu_custom_call.1} parent=11 // pred_region
          %s165 = smul.u32 8, %s23
          %p166 = scmp.lt.s32.totalorder %s165, 7
          %s167 = scalar_select %p166, %s165, 7
          %s168 = smul.addr %s167, 8
          %s169 = scalar_lea.vmem %s1, %s168
          %s170 = smul.u32 8, %s23
        $region16: #{tpu_custom_call.1} parent=11 // pred_fallthru
          _
        // Predicated region
        $region17: #{tpu_custom_call.1} parent=11 // pred_check
          %p171 = pneg %p98
        $region18: #{tpu_custom_call.1} parent=11 // pred_check_branch
          %173 = sbr.rel (%p171) target = $region20
        $region19: #{tpu_custom_call.1} parent=11 // pred_region
          _
        $region20: #{tpu_custom_call.1} parent=11 // pred_fallthru
          _
        // Predicated region
        $region21: #{tpu_custom_call.1} parent=11 // pred_check
          %p174 = pneg %p119
        $region22: #{tpu_custom_call.1} parent=11 // pred_check_branch
          %176 = sbr.rel (%p174) target = $region24
        $region23: #{tpu_custom_call.1} parent=11 // pred_region
          _
        $region24: #{tpu_custom_call.1} parent=11 // pred_fallthru
          _
      $region12: #{tpu_custom_call.1} parent=5 // pred_fallthru
        _
      %p177 = scmp.lt.s32.totalorder %s13, 2
      // Predicated region
      $region25: #{tpu_custom_call.1} parent=5 // pred_check
        %p178 = pneg %p177
      $region26: #{tpu_custom_call.1} parent=5 // pred_check_branch
        %180 = sbr.rel (%p178) target = $region28
      $region27: #{tpu_custom_call.1} parent=5 // pred_region
        // Predicated region
        $region29: #{tpu_custom_call.1} parent=27 // pred_check
          %p181 = pneg %p45
        $region30: #{tpu_custom_call.1} parent=27 // pred_check_branch
          %183 = sbr.rel (%p181) target = $region32
        $region31: #{tpu_custom_call.1} parent=27 // pred_region
          %p184 = scmp.lt.s32.totalorder %s20, 1
          %s185 = scalar_select %p184, %s20, 1
          %s186 = smul.addr %s185, 4
          %s187 = scalar_lea.vmem %s0, %s186
        $region32: #{tpu_custom_call.1} parent=27 // pred_fallthru
          _
      $region28: #{tpu_custom_call.1} parent=5 // pred_fallthru
        _
      %p188 = scmp.le.s32.totalorder 1, %s13
      %p189 = scmp.lt.s32.totalorder %s13, 3
      %p190 = pnand %p188, %p189
      %p191 = pneg %p190
      // Predicated region
      $region33: #{tpu_custom_call.1} parent=5 // pred_check
        _
      $region34: #{tpu_custom_call.1} parent=5 // pred_check_branch
        %193 = sbr.rel (%p190) target = $region36
      $region35: #{tpu_custom_call.1} parent=5 // pred_region
        %s194 = ssub.s32 %s13, 1
        %p195 = scmp.lt.s32.totalorder %s22, 1
        %s196 = scalar_select %p195, %s22, 1
        %s197 = smul.addr %s196, 4
        %s198 = scalar_lea.vmem %s0, %s197
        %p199 = pneg %p51
        %p200 = pneg %p48
        %s201 = smul.u32 8, %s23
        %p202 = scmp.lt.s32.totalorder %s201, 7
        %s203 = scalar_select %p202, %s201, 7
        %s204 = smul.addr %s203, 8
        %s205 = scalar_lea.vmem %s1, %s204
        %p206 = pneg %p77
        %p207 = pneg %p74
        %p208 = pneg %p98
        %p209 = pneg %p95
        %p210 = pneg %p119
        %p211 = pneg %p116
        %p212 = pneg %p147
        %p213 = pneg %p144
        %s214 = sand.u32 %s134, 1
        %s215 = scalar_lea.sflag [#allocation3], %s214
        %s216 = sand.u32 %s134, 1
        %s217 = smul.addr %s216, 2
        %s218 = scalar_lea.vmem [#allocation2], %s217
        %p219 = scmp.lt.s32.totalorder %s22, 1
        %s220 = scalar_select %p219, %s22, 1
        %s221 = smul.addr %s220, 4
        %s222 = scalar_lea.vmem %s0, %s221
        %s223 = smul.u32 8, %s23
        %p224 = scmp.lt.s32.totalorder %s223, 7
        %s225 = scalar_select %p224, %s223, 7
        %s226 = smul.addr %s225, 8
        %s227 = scalar_lea.vmem %s1, %s226
        %s228 = smul.u32 8, %s23
        %v229 = vld [vmem:[%s227] sm:$0xff]
        %v230 = vld [vmem:[%s227 + $0x8] sm:$0xff]
        %v231 = vld [vmem:[%s227 + $0x10] sm:$0xff]
        %v232 = vld [vmem:[%s227 + $0x18] sm:$0xff]
        %v233 = vld [vmem:[%s227 + $0x20] sm:$0xff]
        %v234 = vld [vmem:[%s227 + $0x28] sm:$0xff]
        %v235 = vld [vmem:[%s227 + $0x30] sm:$0xff]
        %v236 = vld [vmem:[%s227 + $0x38] sm:$0xff]
        %v237 = vld [vmem:[%s222] sm:$0x7]
        %vm238 = vcmask 23552
        %v240 = vsel %vm238, %v229, 0
        %v243 = vsel %vm238, %v230, 0
        %v246 = vsel %vm238, %v231, 0
        %v249 = vsel %vm238, %v232, 0
        %v252 = vsel %vm238, %v233, 0
        %v255 = vsel %vm238, %v234, 0
        %v258 = vsel %vm238, %v235, 0
        %v261 = vsel %vm238, %v236, 0
        %vm263 = vcmask 1042432
        %v265 = vsel %vm263, %v237, 0
        %267 = vmatprep.subr.mxu0 0.0
        %268 = vmatpush1.msra.mxu0 %v265
        %269 = vmatprep.subr.mxu0 0.0
        %270 = vmatpush1.msra.mxu0 0.0
        %271 = vmatprep.subr.mxu0 0.0
        %272 = vmatpush1.msra.mxu0 0.0
        %273 = vmatprep.subr.mxu0 0.0
        %274 = vmatpush1.msra.mxu0 0.0
        %275 = vmatprep.subr.mxu0 0.0
        %276 = vmatpush1.msra.mxu0 0.0
        %277 = vmatprep.subr.mxu0 0.0
        %278 = vmatpush1.msra.mxu0 0.0
        %279 = vmatprep.subr.mxu0 0.0
        %280 = vmatpush1.msra.mxu0 0.0
        %281 = vmatprep.subr.mxu0 0.0
        %282 = vmatpush1.msra.mxu0 0.0
        %283 = vmatprep.subr.mxu0 0.0
        %284 = vmatpush1.msra.mxu0 0.0
        %285 = vmatprep.subr.mxu0 0.0
        %286 = vmatpush1.msra.mxu0 0.0
        %287 = vmatprep.subr.mxu0 0.0
        %288 = vmatpush1.msra.mxu0 0.0
        %289 = vmatprep.subr.mxu0 0.0
        %290 = vmatpush1.msra.mxu0 0.0
        %291 = vmatprep.subr.mxu0 0.0
        %292 = vmatpush1.msra.mxu0 0.0
        %293 = vmatprep.subr.mxu0 0.0
        %294 = vmatpush1.msra.mxu0 0.0
        %295 = vmatprep.subr.mxu0 0.0
        %296 = vmatpush1.msra.mxu0 0.0
        %297 = vmatprep.subr.mxu0 0.0
        %298 = vmatpush1.msra.mxu0 0.0
        %299 = vmatprep.subr.mxu0 0.0
        %300 = vmatpush1.msra.mxu0 0.0
        %301 = vmatprep.subr.mxu0 0.0
        %302 = vmatpush1.msra.mxu0 0.0
        %303 = vmatprep.subr.mxu0 0.0
        %304 = vmatpush1.msra.mxu0 0.0
        %305 = vmatprep.subr.mxu0 0.0
        %306 = vmatpush1.msra.mxu0 0.0
        %307 = vmatprep.subr.mxu0 0.0
        %308 = vmatpush1.msra.mxu0 0.0
        %309 = vmatprep.subr.mxu0 0.0
        %310 = vmatpush1.msra.mxu0 0.0
        %311 = vmatprep.subr.mxu0 0.0
        %312 = vmatpush1.msra.mxu0 0.0
        %313 = vmatprep.subr.mxu0 0.0
        %314 = vmatpush1.msra.mxu0 0.0
        %315 = vmatprep.subr.mxu0 0.0
        %316 = vmatpush1.msra.mxu0 0.0
        %317 = vmatprep.subr.mxu0 0.0
        %318 = vmatpush1.msra.mxu0 0.0
        %319 = vmatprep.subr.mxu0 0.0
        %320 = vmatpush1.msra.mxu0 0.0
        %321 = vmatprep.subr.mxu0 0.0
        %322 = vmatpush1.msra.mxu0 0.0
        %323 = vmatprep.subr.mxu0 0.0
        %324 = vmatpush1.msra.mxu0 0.0
        %325 = vmatprep.subr.mxu0 0.0
        %326 = vmatpush1.msra.mxu0 0.0
        %327 = vmatprep.subr.mxu0 0.0
        %328 = vmatpush1.msra.mxu0 0.0
        %329 = vmatprep.subr.mxu0 0.0
        %330 = vmatpush1.msra.mxu0 0.0
        %331 = vmatprep.mubr.f32.mxu0 0.0
        %332 = vmatmul.mubr.f32.gmra.mrb[0].mxu0 %v240
        %v333 = vpop.f32.mrb[0].mxu0
        %v334 = vadd.f32 0.0, %v333
        %v335 = vpop.f32.mrb[0].mxu0
        %336 = vmatprep.mubr.f32.mxu0 0.0
        %337 = vmatmul.mubr.f32.gmra.mrb[0].mxu0 %v243
        %v338 = vpop.f32.mrb[0].mxu0
        %v339 = vadd.f32 0.0, %v338
        %v340 = vpop.f32.mrb[0].mxu0
        %341 = vmatprep.mubr.f32.mxu0 0.0
        %342 = vmatmul.mubr.f32.gmra.mrb[0].mxu0 %v246
        %v343 = vpop.f32.mrb[0].mxu0
        %v344 = vadd.f32 0.0, %v343
        %v345 = vpop.f32.mrb[0].mxu0
        %346 = vmatprep.mubr.f32.mxu0 0.0
        %347 = vmatmul.mubr.f32.gmra.mrb[0].mxu0 %v249
        %v348 = vpop.f32.mrb[0].mxu0
        %v349 = vadd.f32 0.0, %v348
        %v350 = vpop.f32.mrb[0].mxu0
        %351 = vmatprep.mubr.f32.mxu0 0.0
        %352 = vmatmul.mubr.f32.gmra.mrb[0].mxu0 %v252
        %v353 = vpop.f32.mrb[0].mxu0
        %v354 = vadd.f32 0.0, %v353
        %v355 = vpop.f32.mrb[0].mxu0
        %356 = vmatprep.mubr.f32.mxu0 0.0
        %357 = vmatmul.mubr.f32.gmra.mrb[0].mxu0 %v255
        %v358 = vpop.f32.mrb[0].mxu0
        %v359 = vadd.f32 0.0, %v358
        %v360 = vpop.f32.mrb[0].mxu0
        %361 = vmatprep.mubr.f32.mxu0 0.0
        %362 = vmatmul.mubr.f32.gmra.mrb[0].mxu0 %v258
        %v363 = vpop.f32.mrb[0].mxu0
        %v364 = vadd.f32 0.0, %v363
        %v365 = vpop.f32.mrb[0].mxu0
        %366 = vmatprep.mubr.f32.mxu0 0.0
        %367 = vmatmul.mubr.f32.gmra.mrb[0].mxu0 %v261
        %v368 = vpop.f32.mrb[0].mxu0
        %v369 = vadd.f32 0.0, %v368
        %v370 = vpop.f32.mrb[0].mxu0
        %371 = vdwg.mxu0
        %v372 = vmax.f32 %v334, 0.0
        %v373 = vmax.f32 %v339, 0.0
        %v374 = vmax.f32 %v344, 0.0
        %v375 = vmax.f32 %v349, 0.0
        %v376 = vmax.f32 %v354, 0.0
        %v377 = vmax.f32 %v359, 0.0
        %v378 = vmax.f32 %v364, 0.0
        %v379 = vmax.f32 %v369, 0.0
        %v380 = vld [vmem:[%s2] sm:$0xff]
        %v381 = vld [vmem:[%s2 + $0x8] sm:$0xff]
        %v382 = vld [vmem:[%s2 + $0x10] sm:$0xff]
        %v383 = vld [vmem:[%s2 + $0x18] sm:$0xff]
        %vm384 = vcmask 523264
        %v386 = vsel %vm384, %v380, 0
        %v389 = vsel %vm384, %v381, 0
        %v392 = vsel %vm384, %v382, 0
        %v395 = vsel %vm384, %v383, 0
        %397 = vmatprep.subr.mxu0 0.0
        %398 = vmatpush1.msra.mxu0 %v372
        %399 = vmatprep.subr.mxu0 0.0
        %400 = vmatpush1.msra.mxu0 %v373
        %401 = vmatprep.subr.mxu0 0.0
        %402 = vmatpush1.msra.mxu0 %v374
        %403 = vmatprep.subr.mxu0 0.0
        %404 = vmatpush1.msra.mxu0 %v375
        %405 = vmatprep.subr.mxu0 0.0
        %406 = vmatpush1.msra.mxu0 %v376
        %407 = vmatprep.subr.mxu0 0.0
        %408 = vmatpush1.msra.mxu0 %v377
        %409 = vmatprep.subr.mxu0 0.0
        %410 = vmatpush1.msra.mxu0 %v378
        %411 = vmatprep.subr.mxu0 0.0
        %412 = vmatpush1.msra.mxu0 %v379
        %413 = vmatprep.subr.mxu0 0.0
        %414 = vmatpush1.msra.mxu0 0.0
        %415 = vmatprep.subr.mxu0 0.0
        %416 = vmatpush1.msra.mxu0 0.0
        %417 = vmatprep.subr.mxu0 0.0
        %418 = vmatpush1.msra.mxu0 0.0
        %419 = vmatprep.subr.mxu0 0.0
        %420 = vmatpush1.msra.mxu0 0.0
        %421 = vmatprep.subr.mxu0 0.0
        %422 = vmatpush1.msra.mxu0 0.0
        %423 = vmatprep.subr.mxu0 0.0
        %424 = vmatpush1.msra.mxu0 0.0
        %425 = vmatprep.subr.mxu0 0.0
        %426 = vmatpush1.msra.mxu0 0.0
        %427 = vmatprep.subr.mxu0 0.0
        %428 = vmatpush1.msra.mxu0 0.0
        %429 = vmatprep.subr.mxu0 0.0
        %430 = vmatpush1.msra.mxu0 0.0
        %431 = vmatprep.subr.mxu0 0.0
        %432 = vmatpush1.msra.mxu0 0.0
        %433 = vmatprep.subr.mxu0 0.0
        %434 = vmatpush1.msra.mxu0 0.0
        %435 = vmatprep.subr.mxu0 0.0
        %436 = vmatpush1.msra.mxu0 0.0
        %437 = vmatprep.subr.mxu0 0.0
        %438 = vmatpush1.msra.mxu0 0.0
        %439 = vmatprep.subr.mxu0 0.0
        %440 = vmatpush1.msra.mxu0 0.0
        %441 = vmatprep.subr.mxu0 0.0
        %442 = vmatpush1.msra.mxu0 0.0
        %443 = vmatprep.subr.mxu0 0.0
        %444 = vmatpush1.msra.mxu0 0.0
        %445 = vmatprep.subr.mxu0 0.0
        %446 = vmatpush1.msra.mxu0 0.0
        %447 = vmatprep.subr.mxu0 0.0
        %448 = vmatpush1.msra.mxu0 0.0
        %449 = vmatprep.subr.mxu0 0.0
        %450 = vmatpush1.msra.mxu0 0.0
        %451 = vmatprep.subr.mxu0 0.0
        %452 = vmatpush1.msra.mxu0 0.0
        %453 = vmatprep.subr.mxu0 0.0
        %454 = vmatpush1.msra.mxu0 0.0
        %455 = vmatprep.subr.mxu0 0.0
        %456 = vmatpush1.msra.mxu0 0.0
        %457 = vmatprep.subr.mxu0 0.0
        %458 = vmatpush1.msra.mxu0 0.0
        %459 = vmatprep.subr.mxu0 0.0
        %460 = vmatpush1.msra.mxu0 0.0
        %461 = vmatprep.mubr.f32.mxu0 0.0
        %462 = vmatmul.mubr.f32.gmra.mrb[0].mxu0 %v386
        %v463 = vpop.f32.mrb[0].mxu0
        %v464 = vadd.f32 0.0, %v463
        %v465 = vpop.f32.mrb[0].mxu0
        %466 = vmatprep.mubr.f32.mxu0 0.0
        %467 = vmatmul.mubr.f32.gmra.mrb[0].mxu0 %v389
        %v468 = vpop.f32.mrb[0].mxu0
        %v469 = vadd.f32 0.0, %v468
        %v470 = vpop.f32.mrb[0].mxu0
        %471 = vmatprep.mubr.f32.mxu0 0.0
        %472 = vmatmul.mubr.f32.gmra.mrb[0].mxu0 %v392
        %v473 = vpop.f32.mrb[0].mxu0
        %v474 = vadd.f32 0.0, %v473
        %v475 = vpop.f32.mrb[0].mxu0
        %476 = vmatprep.mubr.f32.mxu0 0.0
        %477 = vmatmul.mubr.f32.gmra.mrb[0].mxu0 %v395
        %v478 = vpop.f32.mrb[0].mxu0
        %v479 = vadd.f32 0.0, %v478
        %v480 = vpop.f32.mrb[0].mxu0
        %481 = vdwg.mxu0
        %v482 = vsub.f32 1.0, %v464
        %v483 = vsub.f32 1.0, %v469
        %v484 = vsub.f32 1.0, %v474
        %v485 = vsub.f32 1.0, %v479
        %v486 = vmax.f32 %v482, 0.0
        %v487 = vmax.f32 %v483, 0.0
        %v488 = vmax.f32 %v484, 0.0
        %v489 = vmax.f32 %v485, 0.0
        %v490 = vmin.f32 %v486, 1.0
        %v491 = vmin.f32 %v487, 1.0
        %v492 = vmin.f32 %v488, 1.0
        %v493 = vmin.f32 %v489, 1.0
        %v494 = vld [vmem:[%s3] sm:$0x3]
        %vm495 = vcmask 261120
        %v497 = vsel %vm495, %v494, 0
        %499 = vmatprep.subr.mxu0 0.0
        %500 = vmatpush1.msra.mxu0 %v490
        %501 = vmatprep.subr.mxu0 0.0
        %502 = vmatpush1.msra.mxu0 %v491
        %503 = vmatprep.subr.mxu0 0.0
        %504 = vmatpush1.msra.mxu0 %v492
        %505 = vmatprep.subr.mxu0 0.0
        %506 = vmatpush1.msra.mxu0 %v493
        %507 = vmatprep.subr.mxu0 0.0
        %508 = vmatpush1.msra.mxu0 0.0
        %509 = vmatprep.subr.mxu0 0.0
        %510 = vmatpush1.msra.mxu0 0.0
        %511 = vmatprep.subr.mxu0 0.0
        %512 = vmatpush1.msra.mxu0 0.0
        %513 = vmatprep.subr.mxu0 0.0
        %514 = vmatpush1.msra.mxu0 0.0
        %515 = vmatprep.subr.mxu0 0.0
        %516 = vmatpush1.msra.mxu0 0.0
        %517 = vmatprep.subr.mxu0 0.0
        %518 = vmatpush1.msra.mxu0 0.0
        %519 = vmatprep.subr.mxu0 0.0
        %520 = vmatpush1.msra.mxu0 0.0
        %521 = vmatprep.subr.mxu0 0.0
        %522 = vmatpush1.msra.mxu0 0.0
        %523 = vmatprep.subr.mxu0 0.0
        %524 = vmatpush1.msra.mxu0 0.0
        %525 = vmatprep.subr.mxu0 0.0
        %526 = vmatpush1.msra.mxu0 0.0
        %527 = vmatprep.subr.mxu0 0.0
        %528 = vmatpush1.msra.mxu0 0.0
        %529 = vmatprep.subr.mxu0 0.0
        %530 = vmatpush1.msra.mxu0 0.0
        %531 = vmatprep.subr.mxu0 0.0
        %532 = vmatpush1.msra.mxu0 0.0
        %533 = vmatprep.subr.mxu0 0.0
        %534 = vmatpush1.msra.mxu0 0.0
        %535 = vmatprep.subr.mxu0 0.0
        %536 = vmatpush1.msra.mxu0 0.0
        %537 = vmatprep.subr.mxu0 0.0
        %538 = vmatpush1.msra.mxu0 0.0
        %539 = vmatprep.subr.mxu0 0.0
        %540 = vmatpush1.msra.mxu0 0.0
        %541 = vmatprep.subr.mxu0 0.0
        %542 = vmatpush1.msra.mxu0 0.0
        %543 = vmatprep.subr.mxu0 0.0
        %544 = vmatpush1.msra.mxu0 0.0
        %545 = vmatprep.subr.mxu0 0.0
        %546 = vmatpush1.msra.mxu0 0.0
        %547 = vmatprep.subr.mxu0 0.0
        %548 = vmatpush1.msra.mxu0 0.0
        %549 = vmatprep.subr.mxu0 0.0
        %550 = vmatpush1.msra.mxu0 0.0
        %551 = vmatprep.subr.mxu0 0.0
        %552 = vmatpush1.msra.mxu0 0.0
        %553 = vmatprep.subr.mxu0 0.0
        %554 = vmatpush1.msra.mxu0 0.0
        %555 = vmatprep.subr.mxu0 0.0
        %556 = vmatpush1.msra.mxu0 0.0
        %557 = vmatprep.subr.mxu0 0.0
        %558 = vmatpush1.msra.mxu0 0.0
        %559 = vmatprep.subr.mxu0 0.0
        %560 = vmatpush1.msra.mxu0 0.0
        %561 = vmatprep.subr.mxu0 0.0
        %562 = vmatpush1.msra.mxu0 0.0
        %563 = vmatprep.mubr.f32.mxu0 0.0
        %564 = vmatmul.mubr.f32.gmra.mrb[0].mxu0 %v497
        %v565 = vpop.f32.mrb[0].mxu0
        %v566 = vadd.f32 0.0, %v565
        %v567 = vpop.f32.mrb[0].mxu0
        %568 = vdwg.mxu0
        %v569 = vmax.f32 %v566, 0.0
        %v570 = vmin.f32 %v569, 1.0
        %571 = vst [vmem:[%s218] sm:$0x3] %v570
        %s572 = sand.u32 %s134, 1
        %s573 = scalar_lea.sflag [#allocation3], %s572
        %s574 = sand.u32 %s134, 1
        %s575 = smul.addr %s574, 2
        %s576 = scalar_lea.vmem [#allocation2], %s575
        // Predicated region
        $region37: #{tpu_custom_call.1} parent=35 // pred_check
          %p577 = pneg %p144
        $region38: #{tpu_custom_call.1} parent=35 // pred_check_branch
          %579 = sbr.rel (%p577) target = $region40
        $region39: #{tpu_custom_call.1} parent=35 // pred_region
          %s581 = ssub.s32 32, 32
          %582 = vsyncadd %s573, %s581
          %s583 = smul.addr %s23, 2
          %s584 = sadd.s32 %s22, %s583
          %s585 = smul.addr %s584, 32
          %s586 = scalar_lea.hbm %s4, %s585
          %s588 = sshll.u32 %s576, 4
          %s589 = int_to_ptr.vmem [resolvable:$true] %s588
          %591 = dma.vmem_to_hbm [thread:$0]  %s589, 32, %s586, %s573
        $region40: #{tpu_custom_call.1} parent=35 // pred_fallthru
          _
      $region36: #{tpu_custom_call.1} parent=5 // pred_fallthru
        _
      %p592 = scmp.le.s32.totalorder 2, %s13
      // Predicated region
      $region41: #{tpu_custom_call.1} parent=5 // pred_check
        %p593 = pneg %p592
      $region42: #{tpu_custom_call.1} parent=5 // pred_check_branch
        %595 = sbr.rel (%p593) target = $region44
      $region43: #{tpu_custom_call.1} parent=5 // pred_region
        %s596 = ssub.s32 %s13, 2
        // Predicated region
        $region45: #{tpu_custom_call.1} parent=43 // pred_check
          %p597 = pneg %p150
        $region46: #{tpu_custom_call.1} parent=43 // pred_check_branch
          %599 = sbr.rel (%p597) target = $region48
        $region47: #{tpu_custom_call.1} parent=43 // pred_region
          %s600 = sand.u32 %s135, 1
          %s601 = scalar_lea.sflag [#allocation3], %s600
          %s602 = sand.u32 %s135, 1
          %s603 = smul.addr %s602, 2
          %s604 = scalar_lea.vmem [#allocation2], %s603
          %605 = dma.done %s601, 32
        $region48: #{tpu_custom_call.1} parent=43 // pred_fallthru
          _
      $region44: #{tpu_custom_call.1} parent=5 // pred_fallthru
        _
    $region6: #{tpu_custom_call.1} parent=1 // loop_footer
      %s17 = sadd.s32 1, %s13
    $region7: #{tpu_custom_call.1} parent=1 // loop_footer_branch
      %12 = sbr.rel target = $region3
    $region8: #{tpu_custom_call.1} parent=1 // loop_exit
      _
    %606 = vsyncpa [#allocation3], 1
    %s607 = scalar_lea.sflag [#allocation3], 1
    %608 = vsyncpa %s607, 1

</llo_original>
